<compile_context>
chip_gen: v6e
topology: v6e:2x2x1
jax: 0.10.0
libtpu: 0.0.40
codegen_flags: <defaults>
</compile_context>

<pallas_src>
import functools

import jax
import jax.numpy as jnp
from jax.experimental import pallas as pl
from jax.experimental.pallas import tpu as pltpu


def _round_up(x, m):
    return ((x + m - 1) // m) * m


def fragment_mdn_kernel(p_ref,
                        w1_ref, b1_ref,
                        w2_ref, b2_ref,
                        wh_ref, bh_ref,
                        out_ref, *, n_comp):
    p = p_ref[...]

    # trunk: Linear -> ReLU -> Linear -> ReLU (MXU, f32 accumulation)
    h = jnp.dot(p, w1_ref[...], preferred_element_type=jnp.float32) + b1_ref[...]
    h = jnp.maximum(h, 0.0)
    h = jnp.dot(h, w2_ref[...], preferred_element_type=jnp.float32) + b2_ref[...]
    h = jnp.maximum(h, 0.0)

    # fused heads: one narrow matmul; columns are [logits | mu | raw_std | pad]
    z = jnp.dot(h, wh_ref[...], preferred_element_type=jnp.float32) + bh_ref[...]

    # softplus (stable: logaddexp(x, 0)) only on the sigma lanes.
    lane = jax.lax.broadcasted_iota(jnp.int32, z.shape, 1)
    sig_mask = (lane >= 2 * n_comp) & (lane < 3 * n_comp)
    out_ref[...] = jnp.where(sig_mask, jnp.logaddexp(z, 0.0), z).astype(out_ref.dtype)


def _resident_spec(shape):
    # Full-array block, constant index map -> stays VMEM-resident.  The block
    # index never changes, so a single pipeline buffer suffices.
    return pl.BlockSpec(shape, lambda i: (0, 0), pipeline_mode=pl.Buffered(1))


def fragment_mdn_forward(p, params, *, block_b=8192):
    """p: (B, in_dim) f32. Returns (logits, means, sigma), each (B, n_comp)."""
    B, in_dim = p.shape
    hidden = params["w1"].shape[1]
    n_comp = params["wl"].shape[1]
    head_w = 3 * n_comp
    pad_w = _round_up(head_w, 8)          # 15 -> 16 useful lanes (no 128 pad)

    # Fuse the three heads into one narrow (hidden, pad_w) weight/bias.
    wh = jnp.concatenate([params["wl"], params["wm"], params["ws"]], axis=1)
    bh = jnp.concatenate([params["bl"], params["bm"], params["bs"]], axis=1)
    if pad_w != head_w:
        wh = jnp.pad(wh, ((0, 0), (0, pad_w - head_w)))
        bh = jnp.pad(bh, ((0, 0), (0, pad_w - head_w)))

    # Sublane-align K of the first matmul (zero cols on p / zero rows on w1).
    k_pad = _round_up(in_dim, 8)
    w1 = params["w1"]
    if k_pad != in_dim:
        p = jnp.pad(p, ((0, 0), (0, k_pad - in_dim)))
        w1 = jnp.pad(w1, ((0, k_pad - in_dim), (0, 0)))

    # Batch tile: multiple of 8 sublanes; cap at ceil(B/2) once B is large
    # enough so the grid has >= 2 steps (both v7x TensorCores participate).
    tb = _round_up(min(block_b, B), 8)
    if B >= 16:
        tb = min(tb, _round_up(-(-B // 2), 8))
    b_pad = _round_up(B, tb)
    if b_pad != B:
        p = jnp.pad(p, ((0, b_pad - B), (0, 0)))
    nb = b_pad // tb

    out = pl.pallas_call(
        functools.partial(fragment_mdn_kernel, n_comp=n_comp),
        out_shape=jax.ShapeDtypeStruct((b_pad, pad_w), jnp.float32),
        grid_spec=pltpu.PrefetchScalarGridSpec(
            num_scalar_prefetch=0,
            grid=(nb,),
            in_specs=[
                pl.BlockSpec((tb, k_pad), lambda i: (i, 0)),        # p, tiled over B
                _resident_spec((k_pad, hidden)),                    # w1
                _resident_spec((1, hidden)),                        # b1
                _resident_spec((hidden, hidden)),                   # w2
                _resident_spec((1, hidden)),                        # b2
                _resident_spec((hidden, pad_w)),                    # fused head W
                _resident_spec((1, pad_w)),                         # fused head b
            ],
            out_specs=pl.BlockSpec((tb, pad_w), lambda i: (i, 0)),
        ),
        compiler_params=pltpu.CompilerParams(
            dimension_semantics=("parallel",),
        ),
    )(p, w1, params["b1"], params["w2"], params["b2"], wh, bh)

    out = out[:B]
    logits = out[:, :n_comp]
    means = out[:, n_comp:2 * n_comp]
    sigma = out[:, 2 * n_comp:3 * n_comp]
    return logits, means, sigma


def init_params(key, in_dim=5, hidden_dim=128, n_components=5):
    """Deterministic synthetic weights (PyTorch-Linear init, pre-transposed)."""
    ks = jax.random.split(key, 10)

    def linear(kw, kb, fan_in, fan_out):
        bound = 1.0 / jnp.sqrt(fan_in)
        w = jax.random.uniform(kw, (fan_in, fan_out), jnp.float32, -bound, bound)
        b = jax.random.uniform(kb, (1, fan_out), jnp.float32, -bound, bound)
        return w, b

    w1, b1 = linear(ks[0], ks[1], in_dim, hidden_dim)
    w2, b2 = linear(ks[2], ks[3], hidden_dim, hidden_dim)
    wl, bl = linear(ks[4], ks[5], hidden_dim, n_components)
    wm, bm = linear(ks[6], ks[7], hidden_dim, n_components)
    ws, bs = linear(ks[8], ks[9], hidden_dim, n_components)
    return dict(w1=w1, b1=b1, w2=w2, b2=b2,
                wl=wl, bl=bl, wm=wm, bm=bm, ws=ws, bs=bs)


def reference_forward(p, params):
    """Plain-JAX reference of the same forward pass."""
    h = jnp.maximum(p @ params["w1"] + params["b1"], 0.0)
    h = jnp.maximum(h @ params["w2"] + params["b2"], 0.0)
    logits = h @ params["wl"] + params["bl"]
    means = h @ params["wm"] + params["bm"]
    sigma = jnp.logaddexp(h @ params["ws"] + params["bs"], 0.0)
    return logits, means, sigma


if __name__ == "__main__":
    key = jax.random.PRNGKey(0)
    k_param, k_in1, k_in2 = jax.random.split(key, 3)

    in_dim, hidden_dim, n_comp = 5, 128, 5
    params = init_params(k_param, in_dim, hidden_dim, n_comp)

    # Case 1: tiny batch (single block).
    p_small = jax.random.normal(k_in1, (8, in_dim), dtype=jnp.float32)
    logits, means, sigma = fragment_mdn_forward(p_small, params)
    jax.block_until_ready((logits, means, sigma))
    rl, rm, rs = reference_forward(p_small, params)
    assert jnp.allclose(logits, rl, atol=1e-5, rtol=1e-5)
    assert jnp.allclose(means, rm, atol=1e-5, rtol=1e-5)
    assert jnp.allclose(sigma, rs, atol=1e-5, rtol=1e-5)
    assert bool(jnp.all(sigma > 0.0))

    # Case 2: batch that exercises the multi-step grid + ragged padding path.
    p_big = jax.random.normal(k_in2, (200, in_dim), dtype=jnp.float32)
    logits, means, sigma = fragment_mdn_forward(p_big, params, block_b=64)
    jax.block_until_ready((logits, means, sigma))
    rl, rm, rs = reference_forward(p_big, params)
    assert jnp.allclose(logits, rl, atol=1e-5, rtol=1e-5)
    assert jnp.allclose(means, rm, atol=1e-5, rtol=1e-5)
    assert jnp.allclose(sigma, rs, atol=1e-5, rtol=1e-5)
    assert bool(jnp.all(sigma > 0.0))

    # Case 3: default (large) tile path with B >= 16 -> grid split into >= 2 steps.
    p_def = jax.random.normal(k_in2, (200, in_dim), dtype=jnp.float32)
    logits, means, sigma = fragment_mdn_forward(p_def, params)
    jax.block_until_ready((logits, means, sigma))
    rl, rm, rs = reference_forward(p_def, params)
    assert jnp.allclose(logits, rl, atol=1e-5, rtol=1e-5)
    assert jnp.allclose(means, rm, atol=1e-5, rtol=1e-5)
    assert jnp.allclose(sigma, rs, atol=1e-5, rtol=1e-5)

    print("KERNEL_OK")
</pallas_src>

<mosaic_0001>
module attributes {stable_mosaic.version = 11 : i64} {
  func.func @fragment_mdn_kernel(%arg0: i32, %arg1: memref<8x8xf32, #tpu.memory_space<vmem>>, %arg2: memref<8x128xf32, #tpu.memory_space<vmem>>, %arg3: memref<1x128xf32, #tpu.memory_space<vmem>>, %arg4: memref<128x128xf32, #tpu.memory_space<vmem>>, %arg5: memref<1x128xf32, #tpu.memory_space<vmem>>, %arg6: memref<128x16xf32, #tpu.memory_space<vmem>>, %arg7: memref<1x16xf32, #tpu.memory_space<vmem>>, %arg8: memref<8x16xf32, #tpu.memory_space<vmem>>) attributes {dimension_semantics = [#tpu.dimension_semantics<parallel>], iteration_bounds = array<i64: 1>, scalar_prefetch = 0 : i64, scratch_operands = 0 : i64, tpu.core_type = #tpu.core_type<tc>, window_params = [{transform_indices = @transform_0, window_bounds = array<i64: 8, 8>}, {pipeline_mode = #tpu.pipeline_mode<synchronous>, transform_indices = @transform_1, window_bounds = array<i64: 8, 128>}, {pipeline_mode = #tpu.pipeline_mode<synchronous>, transform_indices = @transform_2, window_bounds = array<i64: 1, 128>}, {pipeline_mode = #tpu.pipeline_mode<synchronous>, transform_indices = @transform_3, window_bounds = array<i64: 128, 128>}, {pipeline_mode = #tpu.pipeline_mode<synchronous>, transform_indices = @transform_4, window_bounds = array<i64: 1, 128>}, {pipeline_mode = #tpu.pipeline_mode<synchronous>, transform_indices = @transform_5, window_bounds = array<i64: 128, 16>}, {pipeline_mode = #tpu.pipeline_mode<synchronous>, transform_indices = @transform_6, window_bounds = array<i64: 1, 16>}, {transform_indices = @transform_7, window_bounds = array<i64: 8, 16>}]} {
    %c0 = arith.constant 0 : index
    %c0_0 = arith.constant 0 : index
    %0 = vector.load %arg1[%c0, %c0_0] : memref<8x8xf32, #tpu.memory_space<vmem>>, vector<8x8xf32>
    %c0_1 = arith.constant 0 : index
    %c0_2 = arith.constant 0 : index
    %1 = vector.load %arg2[%c0_1, %c0_2] : memref<8x128xf32, #tpu.memory_space<vmem>>, vector<8x128xf32>
    %cst = arith.constant dense<0.000000e+00> : vector<8x128xf32>
    %2 = tpu.matmul %0, %1, %cst {dimension_numbers = #tpu.dot_dimension_numbers<[1], [0], [0], [1], [0, 0, 1, 1], [], []>} : vector<8x8xf32>, vector<8x128xf32>, vector<8x128xf32> -> vector<8x128xf32>
    %c0_3 = arith.constant 0 : index
    %c0_4 = arith.constant 0 : index
    %3 = vector.load %arg3[%c0_3, %c0_4] : memref<1x128xf32, #tpu.memory_space<vmem>>, vector<1x128xf32>
    %4 = vector.broadcast %3 : vector<1x128xf32> to vector<8x128xf32>
    %5 = arith.addf %2, %4 : vector<8x128xf32>
    %cst_5 = arith.constant 0.000000e+00 : f32
    %6 = vector.broadcast %cst_5 : f32 to vector<8x128xf32>
    %7 = arith.maximumf %5, %6 : vector<8x128xf32>
    %c0_6 = arith.constant 0 : index
    %c0_7 = arith.constant 0 : index
    %8 = vector.load %arg4[%c0_6, %c0_7] : memref<128x128xf32, #tpu.memory_space<vmem>>, vector<128x128xf32>
    %cst_8 = arith.constant dense<0.000000e+00> : vector<8x128xf32>
    %9 = tpu.matmul %7, %8, %cst_8 {dimension_numbers = #tpu.dot_dimension_numbers<[1], [0], [0], [1], [0, 0, 1, 1], [], []>} : vector<8x128xf32>, vector<128x128xf32>, vector<8x128xf32> -> vector<8x128xf32>
    %c0_9 = arith.constant 0 : index
    %c0_10 = arith.constant 0 : index
    %10 = vector.load %arg5[%c0_9, %c0_10] : memref<1x128xf32, #tpu.memory_space<vmem>>, vector<1x128xf32>
    %11 = vector.broadcast %10 : vector<1x128xf32> to vector<8x128xf32>
    %12 = arith.addf %9, %11 : vector<8x128xf32>
    %cst_11 = arith.constant 0.000000e+00 : f32
    %13 = vector.broadcast %cst_11 : f32 to vector<8x128xf32>
    %14 = arith.maximumf %12, %13 : vector<8x128xf32>
    %c0_12 = arith.constant 0 : index
    %c0_13 = arith.constant 0 : index
    %15 = vector.load %arg6[%c0_12, %c0_13] : memref<128x16xf32, #tpu.memory_space<vmem>>, vector<128x16xf32>
    %cst_14 = arith.constant dense<0.000000e+00> : vector<8x16xf32>
    %16 = tpu.matmul %14, %15, %cst_14 {dimension_numbers = #tpu.dot_dimension_numbers<[1], [0], [0], [1], [0, 0, 1, 1], [], []>} : vector<8x128xf32>, vector<128x16xf32>, vector<8x16xf32> -> vector<8x16xf32>
    %c0_15 = arith.constant 0 : index
    %c0_16 = arith.constant 0 : index
    %17 = vector.load %arg7[%c0_15, %c0_16] : memref<1x16xf32, #tpu.memory_space<vmem>>, vector<1x16xf32>
    %18 = vector.broadcast %17 : vector<1x16xf32> to vector<8x16xf32>
    %19 = arith.addf %16, %18 : vector<8x16xf32>
    %20 = tpu.iota {dimensions = array<i32: 1>} : vector<8x16xi32>
    %c10_i32 = arith.constant 10 : i32
    %21 = vector.broadcast %c10_i32 : i32 to vector<8x16xi32>
    %22 = arith.cmpi sge, %20, %21 : vector<8x16xi32>
    %c15_i32 = arith.constant 15 : i32
    %23 = vector.broadcast %c15_i32 : i32 to vector<8x16xi32>
    %24 = arith.cmpi slt, %20, %23 : vector<8x16xi32>
    %25 = arith.andi %22, %24 : vector<8x16xi1>
    %cst_17 = arith.constant 0.000000e+00 : f32
    %26 = vector.broadcast %cst_17 : f32 to vector<8x16xf32>
    %27 = arith.maximumf %19, %26 : vector<8x16xf32>
    %28 = vector.broadcast %cst_17 : f32 to vector<8x16xf32>
    %29 = arith.subf %19, %28 : vector<8x16xf32>
    %30 = arith.cmpf one, %29, %29 : vector<8x16xf32>
    %31 = vector.broadcast %cst_17 : f32 to vector<8x16xf32>
    %32 = arith.addf %19, %31 : vector<8x16xf32>
    %33 = math.absf %29 : vector<8x16xf32>
    %cst_18 = arith.constant 0.000000e+00 : f32
    %34 = vector.broadcast %cst_18 : f32 to vector<8x16xf32>
    %35 = arith.subf %34, %33 : vector<8x16xf32>
    %36 = math.exp %35 : vector<8x16xf32>
    %37 = math.log1p %36 : vector<8x16xf32>
    %38 = arith.addf %27, %37 : vector<8x16xf32>
    %39 = arith.select %30, %32, %38 : vector<8x16xi1>, vector<8x16xf32>
    %40 = arith.select %25, %39, %19 : vector<8x16xi1>, vector<8x16xf32>
    %c0_19 = arith.constant 0 : index
    %c0_20 = arith.constant 0 : index
    %41 = vector.load %arg8[%c0_19, %c0_20] : memref<8x16xf32, #tpu.memory_space<vmem>>, vector<8x16xf32>
    tpu.vector_store %arg8[%c0_19, %c0_20], %40 {strides = array<i32>} : memref<8x16xf32, #tpu.memory_space<vmem>>, vector<8x16xf32>,
    return
  }
  func.func @transform_0(%arg0: i32) -> (i32, i32) {
    %c0_i32 = arith.constant 0 : i32
    %c0_i32_0 = arith.constant 0 : i32
    return %arg0, %c0_i32 : i32, i32
  }
  func.func @transform_1(%arg0: i32) -> (i32, i32) {
    %c0_i32 = arith.constant 0 : i32
    %c0_i32_0 = arith.constant 0 : i32
    %c0_i32_1 = arith.constant 0 : i32
    return %c0_i32, %c0_i32_0 : i32, i32
  }
  func.func @transform_2(%arg0: i32) -> (i32, i32) {
    %c0_i32 = arith.constant 0 : i32
    %c0_i32_0 = arith.constant 0 : i32
    %c0_i32_1 = arith.constant 0 : i32
    return %c0_i32, %c0_i32_0 : i32, i32
  }
  func.func @transform_3(%arg0: i32) -> (i32, i32) {
    %c0_i32 = arith.constant 0 : i32
    %c0_i32_0 = arith.constant 0 : i32
    %c0_i32_1 = arith.constant 0 : i32
    return %c0_i32, %c0_i32_0 : i32, i32
  }
  func.func @transform_4(%arg0: i32) -> (i32, i32) {
    %c0_i32 = arith.constant 0 : i32
    %c0_i32_0 = arith.constant 0 : i32
    %c0_i32_1 = arith.constant 0 : i32
    return %c0_i32, %c0_i32_0 : i32, i32
  }
  func.func @transform_5(%arg0: i32) -> (i32, i32) {
    %c0_i32 = arith.constant 0 : i32
    %c0_i32_0 = arith.constant 0 : i32
    %c0_i32_1 = arith.constant 0 : i32
    return %c0_i32, %c0_i32_0 : i32, i32
  }
  func.func @transform_6(%arg0: i32) -> (i32, i32) {
    %c0_i32 = arith.constant 0 : i32
    %c0_i32_0 = arith.constant 0 : i32
    %c0_i32_1 = arith.constant 0 : i32
    return %c0_i32, %c0_i32_0 : i32, i32
  }
  func.func @transform_7(%arg0: i32) -> (i32, i32) {
    %c0_i32 = arith.constant 0 : i32
    %c0_i32_0 = arith.constant 0 : i32
    return %arg0, %c0_i32 : i32, i32
  }
}

</mosaic_0001>

<llo_original>
// kernel: tpu_custom_call.1
$region0: #{tpu_custom_call.1}
  #allocation0 [shape = 'u32[]', space=smem, size = 0x4, offset = 0x4, fixed_abs, tag = 'smem constant byte address 0x4 - core index']
  #allocation1 [shape = 'u32[144,128]{1,0:T(1,128)}', space=vmem, size = 0x12000, scoped, tag = 'internal scratch']
  %s0 = inlined_call_operand.vmem [shape: f32[8,8], index: 0, kind: input, shape index: {}]
  %s1 = inlined_call_operand.vmem [shape: f32[8,128], index: 1, kind: input, shape index: {}]
  %s2 = inlined_call_operand.vmem [shape: f32[1,128], index: 2, kind: input, shape index: {}]
  %s3 = inlined_call_operand.vmem [shape: f32[128,128], index: 3, kind: input, shape index: {}]
  %s4 = inlined_call_operand.vmem [shape: f32[1,128], index: 4, kind: input, shape index: {}]
  %s5 = inlined_call_operand.vmem [shape: f32[128,16], index: 5, kind: input, shape index: {}]
  %s6 = inlined_call_operand.vmem [shape: f32[1,16], index: 6, kind: input, shape index: {}]
  %s7 = inlined_call_operand.hbm [shape: f32[8,16], index: 7, kind: output, shape index: {}]
  %s8 = sld [smem:[#allocation0]]
  $region38: #{tpu_custom_call.1} parent=0
    _
  %s10 = ssub.s32 1, %s8
  %s11 = scalar_select 0, %s10, %s8
  $region1: #{tpu_custom_call.1} parent=0
    #allocation2 [shape = 'u8[4096]{0}', space=vmem, size = 0x1000, scoped, tag = 'output window, operand 0, single buffered']
    #allocation3 [shape = 's32[1]{0}', space=sflag, size = 0x4, scoped, tag = 'scoped memory for tpu_custom_call.1']
    %12 = vsyncpa [#allocation3], 0
    // Predicated region
    $region2: #{tpu_custom_call.1} parent=1 // pred_check
      _
    $region3: #{tpu_custom_call.1} parent=1 // pred_check_branch
      %14 = sbr.rel (0) target = $region5
    $region4: #{tpu_custom_call.1} parent=1 // pred_region
      _
    $region5: #{tpu_custom_call.1} parent=1 // pred_fallthru
      _
    // Predicated region
    $region6: #{tpu_custom_call.1} parent=1 // pred_check
      _
    $region7: #{tpu_custom_call.1} parent=1 // pred_check_branch
      %16 = sbr.rel (0) target = $region9
    $region8: #{tpu_custom_call.1} parent=1 // pred_region
      _
    $region9: #{tpu_custom_call.1} parent=1 // pred_fallthru
      _
    // Predicated region
    $region10: #{tpu_custom_call.1} parent=1 // pred_check
      _
    $region11: #{tpu_custom_call.1} parent=1 // pred_check_branch
      %18 = sbr.rel (0) target = $region13
    $region12: #{tpu_custom_call.1} parent=1 // pred_region
      _
    $region13: #{tpu_custom_call.1} parent=1 // pred_fallthru
      _
    // Predicated region
    $region14: #{tpu_custom_call.1} parent=1 // pred_check
      _
    $region15: #{tpu_custom_call.1} parent=1 // pred_check_branch
      %20 = sbr.rel (0) target = $region17
    $region16: #{tpu_custom_call.1} parent=1 // pred_region
      _
    $region17: #{tpu_custom_call.1} parent=1 // pred_fallthru
      _
    // Predicated region
    $region18: #{tpu_custom_call.1} parent=1 // pred_check
      _
    $region19: #{tpu_custom_call.1} parent=1 // pred_check_branch
      %22 = sbr.rel (0) target = $region21
    $region20: #{tpu_custom_call.1} parent=1 // pred_region
      _
    $region21: #{tpu_custom_call.1} parent=1 // pred_fallthru
      _
    // Predicated region
    $region22: #{tpu_custom_call.1} parent=1 // pred_check
      _
    $region23: #{tpu_custom_call.1} parent=1 // pred_check_branch
      %24 = sbr.rel (0) target = $region25
    $region24: #{tpu_custom_call.1} parent=1 // pred_region
      _
    $region25: #{tpu_custom_call.1} parent=1 // pred_fallthru
      _
    // Predicated region
    $region26: #{tpu_custom_call.1} parent=1 // pred_check
      _
    $region27: #{tpu_custom_call.1} parent=1 // pred_check_branch
      %26 = sbr.rel (0) target = $region29
    $region28: #{tpu_custom_call.1} parent=1 // pred_region
      _
    $region29: #{tpu_custom_call.1} parent=1 // pred_fallthru
      _
    %v27 = vld [vmem:[%s0] sm:$0xff]
    %v28 = vld [vmem:[%s1] sm:$0xff]
    %v29 = vld [vmem:[%s2] sm:$0x1]
    %v31 = vlaneseq
    %v32 = vshrl.u32 %v31, 7
    %v33 = vsub.s32 0, %v32
    %v34 = vrot.slane %v29, %v33
    %vm36 = vcmask 64512
    %v38 = vsel %vm36, %v27, 0
    %40 = vmatprep.subr.mxu0 0.0
    %41 = vmatpush1.msra.mxu0 0.0
    %42 = vmatprep.subr.mxu0 0.0
    %43 = vmatpush1.msra.mxu0 0.0
    %44 = vmatprep.subr.mxu0 0.0
    %45 = vmatpush1.msra.mxu0 0.0
    %46 = vmatprep.subr.mxu0 0.0
    %47 = vmatpush1.msra.mxu0 0.0
    %48 = vmatprep.subr.mxu0 0.0
    %49 = vmatpush1.msra.mxu0 0.0
    %50 = vmatprep.subr.mxu0 0.0
    %51 = vmatpush1.msra.mxu0 0.0
    %52 = vmatprep.subr.mxu0 0.0
    %53 = vmatpush1.msra.mxu0 0.0
    %54 = vmatprep.subr.mxu0 0.0
    %55 = vmatpush1.msra.mxu0 0.0
    %56 = vmatprep.subr.mxu0 0.0
    %57 = vmatpush1.msra.mxu0 0.0
    %58 = vmatprep.subr.mxu0 0.0
    %59 = vmatpush1.msra.mxu0 0.0
    %60 = vmatprep.subr.mxu0 0.0
    %61 = vmatpush1.msra.mxu0 0.0
    %62 = vmatprep.subr.mxu0 0.0
    %63 = vmatpush1.msra.mxu0 0.0
    %64 = vmatprep.subr.mxu0 0.0
    %65 = vmatpush1.msra.mxu0 0.0
    %66 = vmatprep.subr.mxu0 0.0
    %67 = vmatpush1.msra.mxu0 0.0
    %68 = vmatprep.subr.mxu0 0.0
    %69 = vmatpush1.msra.mxu0 0.0
    %70 = vmatprep.subr.mxu0 0.0
    %71 = vmatpush1.msra.mxu0 %v28
    %72 = vmatprep.subr.mxu0 0.0
    %73 = vmatpush2.msra.mxu0 0.0
    %74 = vmatprep.subr.mxu0 0.0
    %75 = vmatpush2.msra.mxu0 0.0
    %76 = vmatprep.subr.mxu0 0.0
    %77 = vmatpush2.msra.mxu0 0.0
    %78 = vmatprep.subr.mxu0 0.0
    %79 = vmatpush2.msra.mxu0 0.0
    %80 = vmatprep.subr.mxu0 0.0
    %81 = vmatpush2.msra.mxu0 0.0
    %82 = vmatprep.subr.mxu0 0.0
    %83 = vmatpush2.msra.mxu0 0.0
    %84 = vmatprep.subr.mxu0 0.0
    %85 = vmatpush2.msra.mxu0 0.0
    %86 = vmatprep.subr.mxu0 0.0
    %87 = vmatpush2.msra.mxu0 0.0
    %88 = vmatprep.subr.mxu0 0.0
    %89 = vmatpush2.msra.mxu0 0.0
    %90 = vmatprep.subr.mxu0 0.0
    %91 = vmatpush2.msra.mxu0 0.0
    %92 = vmatprep.subr.mxu0 0.0
    %93 = vmatpush2.msra.mxu0 0.0
    %94 = vmatprep.subr.mxu0 0.0
    %95 = vmatpush2.msra.mxu0 0.0
    %96 = vmatprep.subr.mxu0 0.0
    %97 = vmatpush2.msra.mxu0 0.0
    %98 = vmatprep.subr.mxu0 0.0
    %99 = vmatpush2.msra.mxu0 0.0
    %100 = vmatprep.subr.mxu0 0.0
    %101 = vmatpush2.msra.mxu0 0.0
    %102 = vmatprep.subr.mxu0 0.0
    %103 = vmatpush2.msra.mxu0 0.0
    %104 = vmatprep.mubr.f32.mxu0 0.0
    %105 = vmatmul.mubr.f32.gmra.mxu0 %v38
    %v106 = vpop.f32.mrf.mxu0
    %v107 = vadd.f32 %v34, %v106
    %v108 = vpop.f32.mrf.mxu0
    %109 = vdwg.mxu0
    %v110 = vmax.f32 %v107, 0.0
    %v111 = vld [vmem:[%s3] sm:$0xff]
    %v112 = vld [vmem:[%s3 + $0x8] sm:$0xff]
    %v113 = vld [vmem:[%s3 + $0x10] sm:$0xff]
    %v114 = vld [vmem:[%s3 + $0x18] sm:$0xff]
    %v115 = vld [vmem:[%s3 + $0x20] sm:$0xff]
    %v116 = vld [vmem:[%s3 + $0x28] sm:$0xff]
    %v117 = vld [vmem:[%s3 + $0x30] sm:$0xff]
    %v118 = vld [vmem:[%s3 + $0x38] sm:$0xff]
    %v119 = vld [vmem:[%s3 + $0x40] sm:$0xff]
    %v120 = vld [vmem:[%s3 + $0x48] sm:$0xff]
    %v121 = vld [vmem:[%s3 + $0x50] sm:$0xff]
    %v122 = vld [vmem:[%s3 + $0x58] sm:$0xff]
    %v123 = vld [vmem:[%s3 + $0x60] sm:$0xff]
    %v124 = vld [vmem:[%s3 + $0x68] sm:$0xff]
    %v125 = vld [vmem:[%s3 + $0x70] sm:$0xff]
    %v126 = vld [vmem:[%s3 + $0x78] sm:$0xff]
    %v127 = vld [vmem:[%s4] sm:$0x1]
    %v129 = vlaneseq
    %v130 = vshrl.u32 %v129, 7
    %v131 = vsub.s32 0, %v130
    %v132 = vrot.slane %v127, %v131
    %134 = vmatprep.subr.mxu0 0.0
    %135 = vmatpush1.msra.mxu0 %v126
    %136 = vmatprep.subr.mxu0 0.0
    %137 = vmatpush1.msra.mxu0 %v125
    %138 = vmatprep.subr.mxu0 0.0
    %139 = vmatpush1.msra.mxu0 %v124
    %140 = vmatprep.subr.mxu0 0.0
    %141 = vmatpush1.msra.mxu0 %v123
    %142 = vmatprep.subr.mxu0 0.0
    %143 = vmatpush1.msra.mxu0 %v122
    %144 = vmatprep.subr.mxu0 0.0
    %145 = vmatpush1.msra.mxu0 %v121
    %146 = vmatprep.subr.mxu0 0.0
    %147 = vmatpush1.msra.mxu0 %v120
    %148 = vmatprep.subr.mxu0 0.0
    %149 = vmatpush1.msra.mxu0 %v119
    %150 = vmatprep.subr.mxu0 0.0
    %151 = vmatpush1.msra.mxu0 %v118
    %152 = vmatprep.subr.mxu0 0.0
    %153 = vmatpush1.msra.mxu0 %v117
    %154 = vmatprep.subr.mxu0 0.0
    %155 = vmatpush1.msra.mxu0 %v116
    %156 = vmatprep.subr.mxu0 0.0
    %157 = vmatpush1.msra.mxu0 %v115
    %158 = vmatprep.subr.mxu0 0.0
    %159 = vmatpush1.msra.mxu0 %v114
    %160 = vmatprep.subr.mxu0 0.0
    %161 = vmatpush1.msra.mxu0 %v113
    %162 = vmatprep.subr.mxu0 0.0
    %163 = vmatpush1.msra.mxu0 %v112
    %164 = vmatprep.subr.mxu0 0.0
    %165 = vmatpush1.msra.mxu0 %v111
    %166 = vmatprep.subr.mxu0 0.0
    %167 = vmatpush2.msra.mxu0 0.0
    %168 = vmatprep.subr.mxu0 0.0
    %169 = vmatpush2.msra.mxu0 0.0
    %170 = vmatprep.subr.mxu0 0.0
    %171 = vmatpush2.msra.mxu0 0.0
    %172 = vmatprep.subr.mxu0 0.0
    %173 = vmatpush2.msra.mxu0 0.0
    %174 = vmatprep.subr.mxu0 0.0
    %175 = vmatpush2.msra.mxu0 0.0
    %176 = vmatprep.subr.mxu0 0.0
    %177 = vmatpush2.msra.mxu0 0.0
    %178 = vmatprep.subr.mxu0 0.0
    %179 = vmatpush2.msra.mxu0 0.0
    %180 = vmatprep.subr.mxu0 0.0
    %181 = vmatpush2.msra.mxu0 0.0
    %182 = vmatprep.subr.mxu0 0.0
    %183 = vmatpush2.msra.mxu0 0.0
    %184 = vmatprep.subr.mxu0 0.0
    %185 = vmatpush2.msra.mxu0 0.0
    %186 = vmatprep.subr.mxu0 0.0
    %187 = vmatpush2.msra.mxu0 0.0
    %188 = vmatprep.subr.mxu0 0.0
    %189 = vmatpush2.msra.mxu0 0.0
    %190 = vmatprep.subr.mxu0 0.0
    %191 = vmatpush2.msra.mxu0 0.0
    %192 = vmatprep.subr.mxu0 0.0
    %193 = vmatpush2.msra.mxu0 0.0
    %194 = vmatprep.subr.mxu0 0.0
    %195 = vmatpush2.msra.mxu0 0.0
    %196 = vmatprep.subr.mxu0 0.0
    %197 = vmatpush2.msra.mxu0 0.0
    %198 = vmatprep.mubr.f32.mxu0 0.0
    %199 = vmatmul.mubr.f32.gmra.mxu0 %v110
    %v200 = vpop.f32.mrf.mxu0
    %v201 = vadd.f32 %v132, %v200
    %v202 = vpop.f32.mrf.mxu0
    %203 = vdwg.mxu0
    %v204 = vmax.f32 %v201, 0.0
    %v205 = vld [vmem:[%s5] sm:$0xff]
    %v206 = vld [vmem:[%s5 + $0x8] sm:$0xff]
    %v207 = vld [vmem:[%s5 + $0x10] sm:$0xff]
    %v208 = vld [vmem:[%s5 + $0x18] sm:$0xff]
    %v209 = vld [vmem:[%s5 + $0x20] sm:$0xff]
    %v210 = vld [vmem:[%s5 + $0x28] sm:$0xff]
    %v211 = vld [vmem:[%s5 + $0x30] sm:$0xff]
    %v212 = vld [vmem:[%s5 + $0x38] sm:$0xff]
    %v213 = vld [vmem:[%s5 + $0x40] sm:$0xff]
    %v214 = vld [vmem:[%s5 + $0x48] sm:$0xff]
    %v215 = vld [vmem:[%s5 + $0x50] sm:$0xff]
    %v216 = vld [vmem:[%s5 + $0x58] sm:$0xff]
    %v217 = vld [vmem:[%s5 + $0x60] sm:$0xff]
    %v218 = vld [vmem:[%s5 + $0x68] sm:$0xff]
    %v219 = vld [vmem:[%s5 + $0x70] sm:$0xff]
    %v220 = vld [vmem:[%s5 + $0x78] sm:$0xff]
    %v221 = vld [vmem:[%s6] sm:$0x1]
    %v223 = vlaneseq
    %v224 = vshrl.u32 %v223, 7
    %v225 = vsub.s32 0, %v224
    %v226 = vrot.slane %v221, %v225
    %228 = vmatprep.subr.mxu0 0.0
    %229 = vmatpush1.msra.mxu0 %v220
    %230 = vmatprep.subr.mxu0 0.0
    %231 = vmatpush1.msra.mxu0 %v219
    %232 = vmatprep.subr.mxu0 0.0
    %233 = vmatpush1.msra.mxu0 %v218
    %234 = vmatprep.subr.mxu0 0.0
    %235 = vmatpush1.msra.mxu0 %v217
    %236 = vmatprep.subr.mxu0 0.0
    %237 = vmatpush1.msra.mxu0 %v216
    %238 = vmatprep.subr.mxu0 0.0
    %239 = vmatpush1.msra.mxu0 %v215
    %240 = vmatprep.subr.mxu0 0.0
    %241 = vmatpush1.msra.mxu0 %v214
    %242 = vmatprep.subr.mxu0 0.0
    %243 = vmatpush1.msra.mxu0 %v213
    %244 = vmatprep.subr.mxu0 0.0
    %245 = vmatpush1.msra.mxu0 %v212
    %246 = vmatprep.subr.mxu0 0.0
    %247 = vmatpush1.msra.mxu0 %v211
    %248 = vmatprep.subr.mxu0 0.0
    %249 = vmatpush1.msra.mxu0 %v210
    %250 = vmatprep.subr.mxu0 0.0
    %251 = vmatpush1.msra.mxu0 %v209
    %252 = vmatprep.subr.mxu0 0.0
    %253 = vmatpush1.msra.mxu0 %v208
    %254 = vmatprep.subr.mxu0 0.0
    %255 = vmatpush1.msra.mxu0 %v207
    %256 = vmatprep.subr.mxu0 0.0
    %257 = vmatpush1.msra.mxu0 %v206
    %258 = vmatprep.subr.mxu0 0.0
    %259 = vmatpush1.msra.mxu0 %v205
    %260 = vmatprep.subr.mxu0 0.0
    %261 = vmatpush2.msra.mxu0 0.0
    %262 = vmatprep.subr.mxu0 0.0
    %263 = vmatpush2.msra.mxu0 0.0
    %264 = vmatprep.subr.mxu0 0.0
    %265 = vmatpush2.msra.mxu0 0.0
    %266 = vmatprep.subr.mxu0 0.0
    %267 = vmatpush2.msra.mxu0 0.0
    %268 = vmatprep.subr.mxu0 0.0
    %269 = vmatpush2.msra.mxu0 0.0
    %270 = vmatprep.subr.mxu0 0.0
    %271 = vmatpush2.msra.mxu0 0.0
    %272 = vmatprep.subr.mxu0 0.0
    %273 = vmatpush2.msra.mxu0 0.0
    %274 = vmatprep.subr.mxu0 0.0
    %275 = vmatpush2.msra.mxu0 0.0
    %276 = vmatprep.subr.mxu0 0.0
    %277 = vmatpush2.msra.mxu0 0.0
    %278 = vmatprep.subr.mxu0 0.0
    %279 = vmatpush2.msra.mxu0 0.0
    %280 = vmatprep.subr.mxu0 0.0
    %281 = vmatpush2.msra.mxu0 0.0
    %282 = vmatprep.subr.mxu0 0.0
    %283 = vmatpush2.msra.mxu0 0.0
    %284 = vmatprep.subr.mxu0 0.0
    %285 = vmatpush2.msra.mxu0 0.0
    %286 = vmatprep.subr.mxu0 0.0
    %287 = vmatpush2.msra.mxu0 0.0
    %288 = vmatprep.subr.mxu0 0.0
    %289 = vmatpush2.msra.mxu0 0.0
    %290 = vmatprep.subr.mxu0 0.0
    %291 = vmatpush2.msra.mxu0 0.0
    %292 = vmatprep.mubr.f32.mxu0 0.0
    %293 = vmatmul.mubr.f32.gmra.mxu0 %v204
    %v294 = vpop.f32.mrf.mxu0
    %v295 = vadd.f32 %v226, %v294
    %v296 = vpop.f32.mrf.mxu0
    %297 = vdwg.mxu0
    %v298 = vlaneseq
    %v299 = vand.u32 %v298, 127
    %vm300 = vcmp.ge.s32.totalorder %v299, 10
    %vm301 = vcmp.lt.s32.totalorder %v299, 15
    %vm302 = vmand %vm300, %vm301
    %v303 = vmax.f32 %v295, 0.0
    %vm304 = vcmp.ne.f32.partialorder %v295, %v295
    %v305 = vadd.f32 %v295, 0.0
    %v306 = vand.u32 2147483647, %v295
    %v307 = vsub.f32 0.0, %v306
    %v308 = vmul.f32 %v307, 1.442695
    %v309 = vpow.pop %v308
    %v310 = vadd.f32 %v309, 1.0
    %v311 = vlog2.pop %v310
    %v312 = vmul.f32 %v311, 0.6931472
    %v313 = vmul.f32 -0.5, %v309
    %v314 = vadd.f32 %v313, 1.0
    %v315 = vmul.f32 %v314, %v309
    %v316 = vand.u32 2147483647, %v309
    %vm317 = vcmp.lt.f32.partialorder %v316, 0.0004427343
    %v318 = vsel %vm317, %v315, %v312
    %v319 = vadd.f32 %v303, %v318
    %v320 = vsel %vm304, %v305, %v319
    %v321 = vsel %vm302, %v320, %v295
    %vm322 = vcmask 130048
    %323 = vst.msk [vmem:[#allocation2] sm:$0xff] %vm322, %v321
    // Predicated region
    $region30: #{tpu_custom_call.1} parent=1 // pred_check
      _
    $region31: #{tpu_custom_call.1} parent=1 // pred_check_branch
      %325 = sbr.rel (0) target = $region33
    $region32: #{tpu_custom_call.1} parent=1 // pred_region
      %s327 = ssub.s32 128, 128
      %328 = vsyncadd [#allocation3], %s327
      %s330 = sshll.u32 [#allocation2], 4
      %s331 = int_to_ptr.vmem [resolvable:$true] %s330
      %333 = dma.vmem_to_hbm [thread:$0]  %s331, 128, %s7, [#allocation3]
    $region33: #{tpu_custom_call.1} parent=1 // pred_fallthru
      _
    // Predicated region
    $region34: #{tpu_custom_call.1} parent=1 // pred_check
      _
    $region35: #{tpu_custom_call.1} parent=1 // pred_check_branch
      %335 = sbr.rel (0) target = $region37
    $region36: #{tpu_custom_call.1} parent=1 // pred_region
      %336 = dma.done [#allocation3], 128
    $region37: #{tpu_custom_call.1} parent=1 // pred_fallthru
      _
    %337 = vsyncpa [#allocation3], 1

</llo_original>
